<compile_context>
chip_gen: v5e
topology: v5e:2x2
jax: 0.10.0
libtpu: 0.0.40
codegen_flags: <defaults>
</compile_context>

<pallas_src>
import jax
import jax.numpy as jnp
from jax.experimental import pallas as pl
from jax.experimental.pallas import tpu as pltpu


def _round_up(x, m):
    return ((x + m - 1) // m) * m


def critic_kernel(s_ref, a_ref, w1s_ref, w1a_ref, b1_ref,
                  w2_ref, b2_ref, w3r_ref, b3_ref, o_ref):
    # Layer 1: cat([s, a]) @ W1 + b1  ==  s @ W1_s + a @ W1_a + b1   (bf16 in, f32 acc)
    h1 = (jnp.dot(s_ref[...], w1s_ref[...], preferred_element_type=jnp.float32)
          + jnp.dot(a_ref[...], w1a_ref[...], preferred_element_type=jnp.float32)
          + b1_ref[...])
    h1 = jnp.maximum(h1, 0.0)
    # Layer 2 (bf16 in, f32 acc)
    h2 = (jnp.dot(h1.astype(jnp.bfloat16), w2_ref[...],
                  preferred_element_type=jnp.float32)
          + b2_ref[...])
    h2 = jnp.maximum(h2, 0.0)
    # Layer 3 (out dim = 1): VPU multiply + lane reduction instead of a width-1 MXU matmul.
    q = jnp.sum(h2 * w3r_ref[...], axis=-1, keepdims=True) + b3_ref[...]
    # TODO(synk): output last-dim is 1 -> masked vst; a lane-dense (TB//128,128) relayout
    # was skipped since the output traffic (4 B/row) is negligible vs. input traffic.
    o_ref[...] = q


def init_critic_params(key, s_dim, a_dim, hidden_dim, dtype=jnp.float32):
    """Deterministic PyTorch-style init: U(-1/sqrt(fan_in), 1/sqrt(fan_in))."""
    ks = jax.random.split(key, 6)
    in1 = s_dim + a_dim

    def uni(k, shape, fan_in):
        bound = 1.0 / jnp.sqrt(jnp.asarray(fan_in, dtype))
        return jax.random.uniform(k, shape, dtype, -bound, bound)

    w1 = uni(ks[0], (in1, hidden_dim), in1)          # [s_dim+a_dim, H]
    b1 = uni(ks[1], (1, hidden_dim), in1)
    w2 = uni(ks[2], (hidden_dim, hidden_dim), hidden_dim)
    b2 = uni(ks[3], (1, hidden_dim), hidden_dim)
    w3 = uni(ks[4], (hidden_dim, 1), hidden_dim)
    b3 = uni(ks[5], (1, 1), hidden_dim)
    return {
        "w1_s": w1[:s_dim, :], "w1_a": w1[s_dim:, :], "b1": b1,
        "w2": w2, "b2": b2,
        "w3": w3, "b3": b3,
    }


def critic_forward(s, a, params, s_dim, a_dim, tile_b=1024):
    # Glue: replicate torch's .view(-1, dim)
    s2 = jnp.reshape(s, (-1, s_dim)).astype(jnp.float32)
    a2 = jnp.reshape(a, (-1, a_dim)).astype(jnp.float32)
    B = s2.shape[0]
    H = params["w2"].shape[0]

    # Batch tile: multiple of 8 (f32 sublane), capped for portable VMEM footprint.
    TB = min(tile_b, max(8, _round_up(B, 8)))
    TB = _round_up(TB, 8)
    Bp = _round_up(B, TB)
    pad = Bp - B
    if pad:
        s2 = jnp.pad(s2, ((0, pad), (0, 0)))
        a2 = jnp.pad(a2, ((0, pad), (0, 0)))

    # bf16 matmul inputs (f32 accumulation in-kernel); biases / final weight row stay f32.
    s_bf = s2.astype(jnp.bfloat16)
    a_bf = a2.astype(jnp.bfloat16)
    w1s = params["w1_s"].astype(jnp.bfloat16)
    w1a = params["w1_a"].astype(jnp.bfloat16)
    w2 = params["w2"].astype(jnp.bfloat16)
    b1 = params["b1"].astype(jnp.float32)
    b2 = params["b2"].astype(jnp.float32)
    w3_row = params["w3"].astype(jnp.float32).T      # [1, H]
    b3 = params["b3"].astype(jnp.float32)

    grid = (Bp // TB,)

    def batch_spec(feat):
        return pl.BlockSpec((TB, feat), lambda i: (i, 0))

    def const_spec(shape):
        return pl.BlockSpec(shape, lambda i: (0, 0))

    flops = 2 * Bp * ((s_dim + a_dim) * H + H * H + H)
    bytes_accessed = (Bp * (s_dim + a_dim) * 2 + Bp * 4
                      + ((s_dim + a_dim) * H + H * H) * 2
                      + (3 * H + 1) * 4)

    out = pl.pallas_call(
        critic_kernel,
        out_shape=jax.ShapeDtypeStruct((Bp, 1), jnp.float32),
        grid=grid,
        in_specs=[
            batch_spec(s_dim),                 # s
            batch_spec(a_dim),                 # a
            const_spec((s_dim, H)),            # w1_s
            const_spec((a_dim, H)),            # w1_a
            const_spec((1, H)),                # b1
            const_spec((H, H)),                # w2
            const_spec((1, H)),                # b2
            const_spec((1, H)),                # w3 (transposed row)
            const_spec((1, 1)),                # b3
        ],
        out_specs=pl.BlockSpec((TB, 1), lambda i: (i, 0)),
        compiler_params=pltpu.CompilerParams(
            dimension_semantics=("parallel",)),
        cost_estimate=pl.CostEstimate(
            flops=flops, transcendentals=0, bytes_accessed=bytes_accessed),
    )(s_bf, a_bf, w1s, w1a, b1, w2, b2, w3_row, b3)

    return out[:B]


def critic_ref(s, a, params, s_dim, a_dim):
    """Pure-JAX f32 reference for correctness checking."""
    s2 = jnp.reshape(s, (-1, s_dim)).astype(jnp.float32)
    a2 = jnp.reshape(a, (-1, a_dim)).astype(jnp.float32)
    x = jnp.concatenate([s2, a2], axis=1)
    w1 = jnp.concatenate([params["w1_s"], params["w1_a"]], axis=0)
    h1 = jnp.maximum(x @ w1 + params["b1"], 0.0)
    h2 = jnp.maximum(h1 @ params["w2"] + params["b2"], 0.0)
    return h2 @ params["w3"] + params["b3"]


if __name__ == "__main__":
    s_dim, a_dim, hidden_dim = 8, 4, 32

    key = jax.random.PRNGKey(0)
    k_params, k_s, k_a, k_s2, k_a2 = jax.random.split(key, 5)
    params = init_critic_params(k_params, s_dim, a_dim, hidden_dim)

    # Case 1: tiny batch (single grid step).
    batch = 8
    s = jax.random.normal(k_s, (batch, s_dim), dtype=jnp.float32)
    a = jax.random.normal(k_a, (batch, a_dim), dtype=jnp.float32)
    q = jax.block_until_ready(critic_forward(s, a, params, s_dim, a_dim))
    q_ref = critic_ref(s, a, params, s_dim, a_dim)
    assert q.shape == (batch, 1), q.shape
    assert jnp.allclose(q, q_ref, atol=5e-2, rtol=5e-2), "mismatch vs reference (case 1)"

    # Case 2: multi-tile grid with batch padding (exercises tiling path).
    batch2 = 300
    s2 = jax.random.normal(k_s2, (batch2, s_dim), dtype=jnp.float32)
    a2 = jax.random.normal(k_a2, (batch2, a_dim), dtype=jnp.float32)
    q2 = jax.block_until_ready(critic_forward(s2, a2, params, s_dim, a_dim, tile_b=128))
    q2_ref = critic_ref(s2, a2, params, s_dim, a_dim)
    assert q2.shape == (batch2, 1), q2.shape
    assert jnp.allclose(q2, q2_ref, atol=5e-2, rtol=5e-2), "mismatch vs reference (case 2)"

    print("KERNEL_OK")
</pallas_src>

<mosaic_0001>
module attributes {stable_mosaic.version = 11 : i64} {
  func.func @critic_kernel(%arg0: i32, %arg1: memref<8x8xbf16, #tpu.memory_space<vmem>>, %arg2: memref<8x4xbf16, #tpu.memory_space<vmem>>, %arg3: memref<8x32xbf16, #tpu.memory_space<vmem>>, %arg4: memref<4x32xbf16, #tpu.memory_space<vmem>>, %arg5: memref<1x32xf32, #tpu.memory_space<vmem>>, %arg6: memref<32x32xbf16, #tpu.memory_space<vmem>>, %arg7: memref<1x32xf32, #tpu.memory_space<vmem>>, %arg8: memref<1x32xf32, #tpu.memory_space<vmem>>, %arg9: memref<1x1xf32, #tpu.memory_space<vmem>>, %arg10: memref<8x1xf32, #tpu.memory_space<vmem>>) attributes {dimension_semantics = [#tpu.dimension_semantics<parallel>], iteration_bounds = array<i64: 1>, scalar_prefetch = 0 : i64, scratch_operands = 0 : i64, tpu.core_type = #tpu.core_type<tc>, window_params = [{transform_indices = @transform_0, window_bounds = array<i64: 8, 8>}, {transform_indices = @transform_1, window_bounds = array<i64: 8, 4>}, {pipeline_mode = #tpu.pipeline_mode<synchronous>, transform_indices = @transform_2, window_bounds = array<i64: 8, 32>}, {pipeline_mode = #tpu.pipeline_mode<synchronous>, transform_indices = @transform_3, window_bounds = array<i64: 4, 32>}, {pipeline_mode = #tpu.pipeline_mode<synchronous>, transform_indices = @transform_4, window_bounds = array<i64: 1, 32>}, {pipeline_mode = #tpu.pipeline_mode<synchronous>, transform_indices = @transform_5, window_bounds = array<i64: 32, 32>}, {pipeline_mode = #tpu.pipeline_mode<synchronous>, transform_indices = @transform_6, window_bounds = array<i64: 1, 32>}, {pipeline_mode = #tpu.pipeline_mode<synchronous>, transform_indices = @transform_7, window_bounds = array<i64: 1, 32>}, {pipeline_mode = #tpu.pipeline_mode<synchronous>, transform_indices = @transform_8, window_bounds = array<i64: 1, 1>}, {transform_indices = @transform_9, window_bounds = array<i64: 8, 1>}]} {
    %c0 = arith.constant 0 : index
    %c0_0 = arith.constant 0 : index
    %0 = vector.load %arg1[%c0, %c0_0] : memref<8x8xbf16, #tpu.memory_space<vmem>>, vector<8x8xbf16>
    %c0_1 = arith.constant 0 : index
    %c0_2 = arith.constant 0 : index
    %1 = vector.load %arg3[%c0_1, %c0_2] : memref<8x32xbf16, #tpu.memory_space<vmem>>, vector<8x32xbf16>
    %cst = arith.constant dense<0.000000e+00> : vector<8x32xf32>
    %2 = tpu.matmul %0, %1, %cst {dimension_numbers = #tpu.dot_dimension_numbers<[1], [0], [0], [1], [0, 0, 1, 1], [], []>} : vector<8x8xbf16>, vector<8x32xbf16>, vector<8x32xf32> -> vector<8x32xf32>
    %c0_3 = arith.constant 0 : index
    %c0_4 = arith.constant 0 : index
    %3 = vector.load %arg2[%c0_3, %c0_4] : memref<8x4xbf16, #tpu.memory_space<vmem>>, vector<8x4xbf16>
    %c0_5 = arith.constant 0 : index
    %c0_6 = arith.constant 0 : index
    %4 = vector.load %arg4[%c0_5, %c0_6] : memref<4x32xbf16, #tpu.memory_space<vmem>>, vector<4x32xbf16>
    %cst_7 = arith.constant dense<0.000000e+00> : vector<8x32xf32>
    %5 = tpu.matmul %3, %4, %cst_7 {dimension_numbers = #tpu.dot_dimension_numbers<[1], [0], [0], [1], [0, 0, 1, 1], [], []>} : vector<8x4xbf16>, vector<4x32xbf16>, vector<8x32xf32> -> vector<8x32xf32>
    %6 = arith.addf %2, %5 : vector<8x32xf32>
    %c0_8 = arith.constant 0 : index
    %c0_9 = arith.constant 0 : index
    %7 = vector.load %arg5[%c0_8, %c0_9] : memref<1x32xf32, #tpu.memory_space<vmem>>, vector<1x32xf32>
    %8 = vector.broadcast %7 : vector<1x32xf32> to vector<8x32xf32>
    %9 = arith.addf %6, %8 : vector<8x32xf32>
    %cst_10 = arith.constant 0.000000e+00 : f32
    %10 = vector.broadcast %cst_10 : f32 to vector<8x32xf32>
    %11 = arith.maximumf %9, %10 : vector<8x32xf32>
    %12 = arith.truncf %11 : vector<8x32xf32> to vector<8x32xbf16>
    %c0_11 = arith.constant 0 : index
    %c0_12 = arith.constant 0 : index
    %13 = vector.load %arg6[%c0_11, %c0_12] : memref<32x32xbf16, #tpu.memory_space<vmem>>, vector<32x32xbf16>
    %cst_13 = arith.constant dense<0.000000e+00> : vector<8x32xf32>
    %14 = tpu.matmul %12, %13, %cst_13 {dimension_numbers = #tpu.dot_dimension_numbers<[1], [0], [0], [1], [0, 0, 1, 1], [], []>} : vector<8x32xbf16>, vector<32x32xbf16>, vector<8x32xf32> -> vector<8x32xf32>
    %c0_14 = arith.constant 0 : index
    %c0_15 = arith.constant 0 : index
    %15 = vector.load %arg7[%c0_14, %c0_15] : memref<1x32xf32, #tpu.memory_space<vmem>>, vector<1x32xf32>
    %16 = vector.broadcast %15 : vector<1x32xf32> to vector<8x32xf32>
    %17 = arith.addf %14, %16 : vector<8x32xf32>
    %cst_16 = arith.constant 0.000000e+00 : f32
    %18 = vector.broadcast %cst_16 : f32 to vector<8x32xf32>
    %19 = arith.maximumf %17, %18 : vector<8x32xf32>
    %c0_17 = arith.constant 0 : index
    %c0_18 = arith.constant 0 : index
    %20 = vector.load %arg8[%c0_17, %c0_18] : memref<1x32xf32, #tpu.memory_space<vmem>>, vector<1x32xf32>
    %21 = vector.broadcast %20 : vector<1x32xf32> to vector<8x32xf32>
    %22 = arith.mulf %19, %21 : vector<8x32xf32>
    %cst_19 = arith.constant dense<0.000000e+00> : vector<8xf32>
    %23 = vector.multi_reduction <add>, %22, %cst_19 [1] : vector<8x32xf32> to vector<8xf32>
    %24 = vector.shape_cast %23 : vector<8xf32> to vector<8x1xf32>
    %c0_20 = arith.constant 0 : index
    %c0_21 = arith.constant 0 : index
    %25 = vector.load %arg9[%c0_20, %c0_21] : memref<1x1xf32, #tpu.memory_space<vmem>>, vector<1x1xf32>
    %26 = vector.broadcast %25 : vector<1x1xf32> to vector<8x1xf32>
    %27 = arith.addf %24, %26 : vector<8x1xf32>
    %c0_22 = arith.constant 0 : index
    %c0_23 = arith.constant 0 : index
    %28 = vector.load %arg10[%c0_22, %c0_23] : memref<8x1xf32, #tpu.memory_space<vmem>>, vector<8x1xf32>
    tpu.vector_store %arg10[%c0_22, %c0_23], %27 {strides = array<i32>} : memref<8x1xf32, #tpu.memory_space<vmem>>, vector<8x1xf32>,
    return
  }
  func.func @transform_0(%arg0: i32) -> (i32, i32) {
    %c0_i32 = arith.constant 0 : i32
    %c0_i32_0 = arith.constant 0 : i32
    return %arg0, %c0_i32 : i32, i32
  }
  func.func @transform_1(%arg0: i32) -> (i32, i32) {
    %c0_i32 = arith.constant 0 : i32
    %c0_i32_0 = arith.constant 0 : i32
    return %arg0, %c0_i32 : i32, i32
  }
  func.func @transform_2(%arg0: i32) -> (i32, i32) {
    %c0_i32 = arith.constant 0 : i32
    %c0_i32_0 = arith.constant 0 : i32
    %c0_i32_1 = arith.constant 0 : i32
    return %c0_i32, %c0_i32_0 : i32, i32
  }
  func.func @transform_3(%arg0: i32) -> (i32, i32) {
    %c0_i32 = arith.constant 0 : i32
    %c0_i32_0 = arith.constant 0 : i32
    %c0_i32_1 = arith.constant 0 : i32
    return %c0_i32, %c0_i32_0 : i32, i32
  }
  func.func @transform_4(%arg0: i32) -> (i32, i32) {
    %c0_i32 = arith.constant 0 : i32
    %c0_i32_0 = arith.constant 0 : i32
    %c0_i32_1 = arith.constant 0 : i32
    return %c0_i32, %c0_i32_0 : i32, i32
  }
  func.func @transform_5(%arg0: i32) -> (i32, i32) {
    %c0_i32 = arith.constant 0 : i32
    %c0_i32_0 = arith.constant 0 : i32
    %c0_i32_1 = arith.constant 0 : i32
    return %c0_i32, %c0_i32_0 : i32, i32
  }
  func.func @transform_6(%arg0: i32) -> (i32, i32) {
    %c0_i32 = arith.constant 0 : i32
    %c0_i32_0 = arith.constant 0 : i32
    %c0_i32_1 = arith.constant 0 : i32
    return %c0_i32, %c0_i32_0 : i32, i32
  }
  func.func @transform_7(%arg0: i32) -> (i32, i32) {
    %c0_i32 = arith.constant 0 : i32
    %c0_i32_0 = arith.constant 0 : i32
    %c0_i32_1 = arith.constant 0 : i32
    return %c0_i32, %c0_i32_0 : i32, i32
  }
  func.func @transform_8(%arg0: i32) -> (i32, i32) {
    %c0_i32 = arith.constant 0 : i32
    %c0_i32_0 = arith.constant 0 : i32
    %c0_i32_1 = arith.constant 0 : i32
    return %c0_i32, %c0_i32_0 : i32, i32
  }
  func.func @transform_9(%arg0: i32) -> (i32, i32) {
    %c0_i32 = arith.constant 0 : i32
    %c0_i32_0 = arith.constant 0 : i32
    return %arg0, %c0_i32 : i32, i32
  }
}

</mosaic_0001>

<llo_original>
// kernel: tpu_custom_call.1
$region0: #{tpu_custom_call.1}
  #allocation0 [shape = 'u32[]', space=smem, size = 0x4, offset = 0x4, fixed_abs, tag = 'smem constant byte address 0x4 - core index']
  #allocation1 [shape = 'u32[72,128]{1,0:T(1,128)}', space=vmem, size = 0x9000, scoped, tag = 'internal scratch']
  #allocation2 [shape = 'f32[1,1]{1,0:T(1,128)S(1)}', space=vmem, size = 0x200, scoped, tag = 'scoped memory for tpu_custom_call.1']
  %s0 = inlined_call_operand.vmem [shape: bf16[8,8], index: 0, kind: input, shape index: {}]
  %s1 = inlined_call_operand.vmem [shape: bf16[8,4], index: 1, kind: input, shape index: {}]
  %s2 = inlined_call_operand.vmem [shape: bf16[8,32], index: 2, kind: input, shape index: {}]
  %s3 = inlined_call_operand.vmem [shape: bf16[4,32], index: 3, kind: input, shape index: {}]
  %s4 = inlined_call_operand.vmem [shape: f32[1,32], index: 4, kind: input, shape index: {}]
  %s5 = inlined_call_operand.hbm [shape: bf16[32,32], index: 5, kind: input, shape index: {}]
  %s6 = inlined_call_operand.vmem [shape: f32[1,32], index: 6, kind: input, shape index: {}]
  %s7 = inlined_call_operand.vmem [shape: f32[1,32], index: 7, kind: input, shape index: {}]
  %s8 = inlined_call_operand.<no memory space> [shape: f32[1,1], index: 8, kind: input, shape index: {}]
  %s9 = inlined_call_operand.vmem [shape: f32[8,1], index: 9, kind: output, shape index: {}]
  %s10 = sld [smem:[#allocation0]]
  $region50: #{tpu_custom_call.1} parent=0
    _
  %s12 = ssub.s32 1, %s10
  %s13 = scalar_select 0, %s12, %s10
  %v14 = vstv %s8
  %15 = vst [vmem:[#allocation2] sm:$0x1] %v14
  $region1: #{tpu_custom_call.1} parent=0
    #allocation3 [shape = 'u8[8192]{0}', space=vmem, size = 0x2000, scoped, tag = 'input window, operand 5, single buffered']
    #allocation4 [shape = 's32[1]{0}', space=sflag, size = 0x4, scoped, tag = 'scoped memory for tpu_custom_call.1']
    %16 = vsyncpa [#allocation4], 0
    // Predicated region
    $region2: #{tpu_custom_call.1} parent=1 // pred_check
      _
    $region3: #{tpu_custom_call.1} parent=1 // pred_check_branch
      %18 = sbr.rel (0) target = $region5
    $region4: #{tpu_custom_call.1} parent=1 // pred_region
      _
    $region5: #{tpu_custom_call.1} parent=1 // pred_fallthru
      _
    // Predicated region
    $region6: #{tpu_custom_call.1} parent=1 // pred_check
      _
    $region7: #{tpu_custom_call.1} parent=1 // pred_check_branch
      %20 = sbr.rel (0) target = $region9
    $region8: #{tpu_custom_call.1} parent=1 // pred_region
      _
    $region9: #{tpu_custom_call.1} parent=1 // pred_fallthru
      _
    // Predicated region
    $region10: #{tpu_custom_call.1} parent=1 // pred_check
      _
    $region11: #{tpu_custom_call.1} parent=1 // pred_check_branch
      %22 = sbr.rel (0) target = $region13
    $region12: #{tpu_custom_call.1} parent=1 // pred_region
      _
    $region13: #{tpu_custom_call.1} parent=1 // pred_fallthru
      _
    // Predicated region
    $region14: #{tpu_custom_call.1} parent=1 // pred_check
      _
    $region15: #{tpu_custom_call.1} parent=1 // pred_check_branch
      %24 = sbr.rel (0) target = $region17
    $region16: #{tpu_custom_call.1} parent=1 // pred_region
      _
    $region17: #{tpu_custom_call.1} parent=1 // pred_fallthru
      _
    // Predicated region
    $region18: #{tpu_custom_call.1} parent=1 // pred_check
      _
    $region19: #{tpu_custom_call.1} parent=1 // pred_check_branch
      %26 = sbr.rel (0) target = $region21
    $region20: #{tpu_custom_call.1} parent=1 // pred_region
      _
    $region21: #{tpu_custom_call.1} parent=1 // pred_fallthru
      _
    // Predicated region
    $region22: #{tpu_custom_call.1} parent=1 // pred_check
      _
    $region23: #{tpu_custom_call.1} parent=1 // pred_check_branch
      %28 = sbr.rel (0) target = $region25
    $region24: #{tpu_custom_call.1} parent=1 // pred_region
      %30 = vsyncadd [#allocation4], 0
      %s31 = sshll.u32 %s5, 4
      %s32 = int_to_ptr.hbm [resolvable:$true] %s31
      %s33 = sshll.u32 [#allocation3], 4
      %s34 = int_to_ptr.vmem [resolvable:$true] %s33
      %39 = dma.hbm_to_vmem [thread:$0]  %s32, 256, %s34, [#allocation4], 64, 64, 4
    $region25: #{tpu_custom_call.1} parent=1 // pred_fallthru
      _
    // Predicated region
    $region26: #{tpu_custom_call.1} parent=1 // pred_check
      _
    $region27: #{tpu_custom_call.1} parent=1 // pred_check_branch
      %41 = sbr.rel (0) target = $region29
    $region28: #{tpu_custom_call.1} parent=1 // pred_region
      _
    $region29: #{tpu_custom_call.1} parent=1 // pred_fallthru
      _
    // Predicated region
    $region30: #{tpu_custom_call.1} parent=1 // pred_check
      _
    $region31: #{tpu_custom_call.1} parent=1 // pred_check_branch
      %43 = sbr.rel (0) target = $region33
    $region32: #{tpu_custom_call.1} parent=1 // pred_region
      _
    $region33: #{tpu_custom_call.1} parent=1 // pred_fallthru
      _
    // Predicated region
    $region34: #{tpu_custom_call.1} parent=1 // pred_check
      _
    $region35: #{tpu_custom_call.1} parent=1 // pred_check_branch
      %45 = sbr.rel (0) target = $region37
    $region36: #{tpu_custom_call.1} parent=1 // pred_region
      _
    $region37: #{tpu_custom_call.1} parent=1 // pred_fallthru
      _
    // Predicated region
    $region38: #{tpu_custom_call.1} parent=1 // pred_check
      _
    $region39: #{tpu_custom_call.1} parent=1 // pred_check_branch
      %47 = sbr.rel (0) target = $region41
    $region40: #{tpu_custom_call.1} parent=1 // pred_region
      %49 = dma.done [#allocation4], 256
    $region41: #{tpu_custom_call.1} parent=1 // pred_fallthru
      _
    %v51 = vld [vmem:[%s0] sm:$0xf]
    %v52 = vld [vmem:[%s2] sm:$0xf]
    %v53 = vld [vmem:[%s1] sm:$0xf]
    %v54 = vld [vmem:[%s3] sm:$0x3]
    %vm55 = vcmask 31744
    %v57 = vsel %vm55, %v53, 0
    %vm59 = vcmask 1041408
    %v61 = vsel %vm59, %v54, 0
    %63 = vmatpush.bf16.msra.mxu0 0
    %64 = vmatpush.bf16.msra.mxu0 0
    %65 = vmatpush.bf16.msra.mxu0 0
    %66 = vmatpush.bf16.msra.mxu0 0
    %67 = vmatpush.bf16.msra.mxu0 0
    %68 = vmatpush.bf16.msra.mxu0 0
    %69 = vmatpush.bf16.msra.mxu0 0
    %70 = vmatpush.bf16.msra.mxu0 %v61
    %71 = vmatmul.bf16.gmra.mxu0 %v57
    %v72 = vpop.f32.mrf.mxu0
    %v73 = vadd.f32 0.0, %v72
    %v74 = vpop.f32.mrf.mxu0
    %75 = vdwg.mxu0
    %vm76 = vcmask 64512
    %v78 = vsel %vm76, %v51, 0
    %vm80 = vcmask 1043456
    %v82 = vsel %vm80, %v52, 0
    %84 = vmatpush.bf16.msra.mxu0 0
    %85 = vmatpush.bf16.msra.mxu0 0
    %86 = vmatpush.bf16.msra.mxu0 0
    %87 = vmatpush.bf16.msra.mxu0 0
    %88 = vmatpush.bf16.msra.mxu0 0
    %89 = vmatpush.bf16.msra.mxu0 0
    %90 = vmatpush.bf16.msra.mxu0 0
    %91 = vmatpush.bf16.msra.mxu0 %v82
    %92 = vmatmul.bf16.gmra.mxu0 %v78
    %v93 = vpop.f32.mrf.mxu0
    %v94 = vadd.f32 %v73, %v93
    %v95 = vpop.f32.mrf.mxu0
    %96 = vdwg.mxu0
    %v97 = vld [vmem:[%s4] sm:$0x1]
    %v99 = vperm.slane %v97, 0
    %v101 = vadd.f32 %v94, %v99
    %v102 = vmax.f32 %v101, 0.0
    %v103 = vpack.c.bf16 %v102, %v102
    %v104 = vld [vmem:[#allocation3] sm:$0xf]
    %v105 = vld [vmem:[#allocation3 + $0x4] sm:$0xf]
    %v106 = vld [vmem:[#allocation3 + $0x8] sm:$0xf]
    %v107 = vld [vmem:[#allocation3 + $0xc] sm:$0xf]
    %v108 = vld [vmem:[%s6] sm:$0x1]
    %v110 = vperm.slane %v108, 0
    %v116 = vunpack.c.l.b16 %v104
    %v117 = vunpack.c.l.b16 %v105
    %v118 = vunpack.c.l.b16 %v106
    %v119 = vunpack.c.l.b16 %v107
    %v120 = vpack.c.b16 %v117, %v116
    %v121 = vpack.c.b16 %v119, %v118
    %vm124 = vcmask 261120
    %v126 = vsel %vm124, %v103, 0
    %128 = vmatpush.bf16.msra.mxu0 0
    %129 = vmatpush.bf16.msra.mxu0 0
    %130 = vmatpush.bf16.msra.mxu0 0
    %131 = vmatpush.bf16.msra.mxu0 0
    %132 = vmatpush.bf16.msra.mxu0 0
    %133 = vmatpush.bf16.msra.mxu0 0
    %134 = vmatpush.bf16.msra.mxu0 %v121
    %135 = vmatpush.bf16.msra.mxu0 %v120
    %136 = vmatmul.bf16.gmra.mxu0 %v126
    %v137 = vpop.f32.mrf.mxu0
    %v138 = vadd.f32 %v110, %v137
    %v139 = vpop.f32.mrf.mxu0
    %140 = vdwg.mxu0
    %v141 = vmax.f32 %v138, 0.0
    %v142 = vld [vmem:[%s7] sm:$0x1]
    %v144 = vperm.slane %v142, 0
    %v146 = vmul.f32 %v141, %v144
    %v147 = vsel %vm124, %v146, 0.0
    %148 = vadd.xlane.f32.xlu0 %v147
    %v149 = vpop.xlane.xlu0 %148
    %v150 = vld [vmem:[#allocation2] sm:$0x1]
    %v152 = vperm.slane %v150, 0
    %v154 = vadd.f32 %v149, %v152
    %vm155 = vcmask 7168
    %156 = vst.msk [vmem:[%s9] sm:$0xff] %vm155, %v154
    // Predicated region
    $region42: #{tpu_custom_call.1} parent=1 // pred_check
      _
    $region43: #{tpu_custom_call.1} parent=1 // pred_check_branch
      %158 = sbr.rel (0) target = $region45
    $region44: #{tpu_custom_call.1} parent=1 // pred_region
      _
    $region45: #{tpu_custom_call.1} parent=1 // pred_fallthru
      _
    // Predicated region
    $region46: #{tpu_custom_call.1} parent=1 // pred_check
      _
    $region47: #{tpu_custom_call.1} parent=1 // pred_check_branch
      %160 = sbr.rel (0) target = $region49
    $region48: #{tpu_custom_call.1} parent=1 // pred_region
      _
    $region49: #{tpu_custom_call.1} parent=1 // pred_fallthru
      _
    %161 = vsyncpa [#allocation4], 1

</llo_original>
